<compile_context>
chip_gen: v6e
topology: v6e:2x2x1
jax: 0.10.0
libtpu: 0.0.40
codegen_flags: <defaults>
</compile_context>

<pallas_src>
import functools

import jax
import jax.numpy as jnp
from jax.experimental import pallas as pl
from jax.experimental.pallas import tpu as pltpu

LANE = 128          # vreg lane width; every kernel-side buffer is 128-lane dense
NUM_CLASSES = 9


# ----------------------------------------------------------------------------- kernel
def rnn_wave_kernel(sent_ref, h0_ref, w_ref, misc_ref, out_ref, *,
                    seq_len, num_layers, hidden):
    """Fused embedding gather + wavefront stacked tanh-RNN + Linear + ReLU.

    sent_ref : (seq_len,) int32 SMEM (scalar prefetch)   token ids
    h0_ref   : (1, LANE) f32    initial hidden; layer l lives in lanes [l*h, (l+1)*h)
    w_ref    : (3, LANE, LANE) bf16
               [0] = Wih_0 padded (emb -> layer0, [in, out])
               [1] = wavefront block matrix (diag: Whh_l, super-diag block: Wih_l, l>=1)
               [2] = final FC folded onto the last-layer slot rows
    misc_ref : (2 + vocab+1, LANE) f32   row0 = rnn bias row, row1 = fc bias row,
                                         rows 2.. = embedding table (lane-padded)
    out_ref  : (seq_len, LANE) f32       lanes [0, 9) = ReLU(logits), rest 0
    """
    # --- fused embedding gather: SMEM ids drive dynamic VMEM row reads ---------------
    xrows = [misc_ref[pl.ds(2 + sent_ref[t], 1), :] for t in range(seq_len)]
    x = jnp.concatenate(xrows, axis=0).astype(jnp.bfloat16)            # (seq_len, LANE)

    wih0 = w_ref[0]                                                    # (LANE, LANE) bf16
    wavew = w_ref[1]                                                   # (LANE, LANE) bf16
    wfc = w_ref[2]                                                     # (LANE, LANE) bf16
    bias = misc_ref[0:1, :]                                            # (1, LANE) f32
    bfc = misc_ref[1:2, :]                                             # (1, LANE) f32

    # --- hoisted layer-0 input projection for all timesteps (one MXU op) -------------
    in_proj = jnp.dot(x, wih0, preferred_element_type=jnp.float32)     # (seq_len, LANE)

    # --- wavefront recurrence: one (1,LANE)@(LANE,LANE) matmul + f32 tanh per wave ----
    lane_idx = jax.lax.broadcasted_iota(jnp.int32, (1, LANE), 1)
    s = h0_ref[...]                                                    # (1, LANE) f32
    out_rows = []
    for w in range(seq_len + num_layers - 1):                          # fully unrolled
        pre = jnp.dot(s.astype(jnp.bfloat16), wavew,
                      preferred_element_type=jnp.float32) + bias
        if w < seq_len:                                                # layer-0 input term
            pre = pre + in_proj[w:w + 1, :]
        new_s = jnp.tanh(pre)                                          # f32 tanh (v5e-safe)
        lo = max(0, w - seq_len + 1)                                   # active layer slots
        hi = min(num_layers - 1, w)
        if lo == 0 and hi == num_layers - 1:
            s = new_s                                                  # all slots active
        else:                                                          # boundary waves only
            mask = (lane_idx >= lo * hidden) & (lane_idx < (hi + 1) * hidden)
            s = jnp.where(mask, new_s, s)
        if w >= num_layers - 1:                                        # last-layer slot valid
            out_rows.append(s)

    # --- final Linear + ReLU: FC weight folded onto the last-layer lane slot ----------
    h_last = jnp.concatenate(out_rows, axis=0).astype(jnp.bfloat16)    # (seq_len, LANE)
    logits = jnp.dot(h_last, wfc, preferred_element_type=jnp.float32) + bfc
    out_ref[...] = jnp.maximum(logits, 0.0)


# ----------------------------------------------------------------------------- one-time packing
def prepare_params(params, *, num_layers, hidden_size, emb_dim):
    """Hoisted out of the forward path: pack weights into the kernel's VMEM layout."""
    L, h = num_layers, hidden_size
    assert L * h <= LANE and emb_dim <= LANE and NUM_CLASSES <= LANE

    # layer-0 input weight, [in, out] layout, padded to (LANE, LANE)
    wih0 = jnp.zeros((LANE, LANE), jnp.float32)
    wih0 = wih0.at[:emb_dim, :h].set(params["weight_ih"][0].T)

    # wavefront block matrix: diagonal blocks = Whh_l, super-diagonal blocks = Wih_l (l>=1)
    wavew = jnp.zeros((LANE, LANE), jnp.float32)
    for l in range(L):
        wavew = wavew.at[l * h:(l + 1) * h, l * h:(l + 1) * h].set(params["weight_hh"][l].T)
        if l >= 1:
            wavew = wavew.at[(l - 1) * h:l * h, l * h:(l + 1) * h].set(params["weight_ih"][l].T)

    # final FC folded onto the last-layer slot rows; lane-dense output columns
    wfc = jnp.zeros((LANE, LANE), jnp.float32)
    wfc = wfc.at[(L - 1) * h:L * h, :NUM_CLASSES].set(params["fc1_weight"].T)

    weights = jnp.stack([wih0, wavew, wfc]).astype(jnp.bfloat16)       # (3, LANE, LANE)

    bias_row = jnp.zeros((1, LANE), jnp.float32)
    for l in range(L):
        bias_row = bias_row.at[0, l * h:(l + 1) * h].set(
            params["bias_ih"][l] + params["bias_hh"][l])
    bfc_row = jnp.zeros((1, LANE), jnp.float32).at[0, :NUM_CLASSES].set(params["fc1_bias"])
    emb_pad = jnp.zeros((params["emb_weight"].shape[0], LANE), jnp.float32)
    emb_pad = emb_pad.at[:, :emb_dim].set(params["emb_weight"])
    misc = jnp.concatenate([bias_row, bfc_row, emb_pad], axis=0)        # (2+vocab+1, LANE) f32

    return {"weights": weights, "misc": misc}


# ----------------------------------------------------------------------------- forward
@functools.partial(jax.jit, static_argnames=("num_layers", "hidden_size"))
def rnn_model_forward(sentence, prep, h0, *, num_layers, hidden_size):
    """Pallas implementation of RNN_model.forward for one (unbatched) sentence."""
    seq_len = sentence.shape[0]
    # only per-call glue: pack h0 (L, h) into the state-lane layout
    h0_row = jnp.zeros((1, LANE), jnp.float32).at[0, :num_layers * hidden_size].set(
        h0.reshape(-1))

    kernel = functools.partial(rnn_wave_kernel, seq_len=seq_len,
                               num_layers=num_layers, hidden=hidden_size)
    grid_spec = pltpu.PrefetchScalarGridSpec(
        num_scalar_prefetch=1,                                   # token ids -> SMEM
        grid=(1,),
        in_specs=[
            pl.BlockSpec((1, LANE), lambda i, s: (0, 0)),                       # h0_row
            pl.BlockSpec((3, LANE, LANE), lambda i, s: (0, 0, 0)),              # packed weights
            pl.BlockSpec(prep["misc"].shape, lambda i, s: (0, 0)),              # f32 misc + emb
        ],
        out_specs=pl.BlockSpec((seq_len, LANE), lambda i, s: (0, 0)),
    )
    out = pl.pallas_call(
        kernel,
        out_shape=jax.ShapeDtypeStruct((seq_len, LANE), jnp.float32),
        grid_spec=grid_spec,
        compiler_params=pltpu.CompilerParams(dimension_semantics=("arbitrary",)),
    )(sentence.astype(jnp.int32), h0_row, prep["weights"], prep["misc"])
    return out[:, :NUM_CLASSES]                                   # lane-dense kernel output


# ----------------------------------------------------------------------------- params
def xavier_normal(key, shape):
    fan_out, fan_in = shape[-2], shape[-1]
    std = (2.0 / (fan_in + fan_out)) ** 0.5
    return std * jax.random.normal(key, shape, dtype=jnp.float32)


def init_params(key, vocab_size, emb_dim, hidden_size, num_layers):
    keys = jax.random.split(key, 4 + 4 * num_layers)
    ki = iter(keys)
    params = {
        "emb_weight": xavier_normal(next(ki), (vocab_size + 1, emb_dim)),
        "weight_ih": [], "weight_hh": [], "bias_ih": [], "bias_hh": [],
        "fc1_weight": xavier_normal(next(ki), (9, hidden_size)),
        "fc1_bias": 0.1 * jax.random.normal(next(ki), (9,), dtype=jnp.float32),
    }
    bound = 1.0 / jnp.sqrt(hidden_size)
    for l in range(num_layers):
        in_dim = emb_dim if l == 0 else hidden_size
        params["weight_ih"].append(xavier_normal(next(ki), (hidden_size, in_dim)))
        params["weight_hh"].append(xavier_normal(next(ki), (hidden_size, hidden_size)))
        params["bias_ih"].append(
            jax.random.uniform(next(ki), (hidden_size,), jnp.float32, -bound, bound))
        params["bias_hh"].append(
            jax.random.uniform(next(ki), (hidden_size,), jnp.float32, -bound, bound))
    return params


# ----------------------------------------------------------------------------- reference
def ref_forward(sentence, params, h0, *, num_layers):
    x = jnp.take(params["emb_weight"], sentence, axis=0)
    layer_in = x
    for l in range(num_layers):
        wih = params["weight_ih"][l].T
        whh = params["weight_hh"][l].T
        b = params["bias_ih"][l] + params["bias_hh"][l]
        h = h0[l]
        outs = []
        for t in range(x.shape[0]):
            h = jnp.tanh(layer_in[t] @ wih + h @ whh + b)
            outs.append(h)
        layer_in = jnp.stack(outs)
    logits = layer_in @ params["fc1_weight"].T + params["fc1_bias"]
    return jnp.maximum(logits, 0.0)


# ----------------------------------------------------------------------------- main
if __name__ == "__main__":
    vocab_size = 50
    emb_dim = 32
    hidden_size = 32
    num_layers = 3
    seq_len = 8          # max_len

    root = jax.random.PRNGKey(0)
    k_param, k_tok, k_h0 = jax.random.split(root, 3)

    params = init_params(k_param, vocab_size, emb_dim, hidden_size, num_layers)
    prep = prepare_params(params, num_layers=num_layers, hidden_size=hidden_size,
                          emb_dim=emb_dim)

    sentence = jax.random.randint(k_tok, (seq_len,), 0, vocab_size + 1, dtype=jnp.int32)
    # forward() draws h_0 = torch.rand(num_layers, hidden_size); sample it deterministically.
    h0 = jax.random.uniform(k_h0, (num_layers, hidden_size), dtype=jnp.float32)

    out = rnn_model_forward(sentence, prep, h0,
                            num_layers=num_layers, hidden_size=hidden_size)
    out = jax.block_until_ready(out)

    ref = ref_forward(sentence, params, h0, num_layers=num_layers)
    assert out.shape == (seq_len, NUM_CLASSES), out.shape
    # bf16 matmul operands vs. f32 reference: tolerance per review guidance.
    assert jnp.allclose(out, ref, rtol=3e-2, atol=3e-2), (out, ref)

    print("KERNEL_OK")
</pallas_src>

<mosaic_0001>
module attributes {stable_mosaic.version = 11 : i64} {
  func.func @rnn_wave_kernel(%arg0: i32, %arg1: memref<8xi32, #tpu.memory_space<smem>>, %arg2: memref<1x128xf32, #tpu.memory_space<vmem>>, %arg3: memref<3x128x128xbf16, #tpu.memory_space<vmem>>, %arg4: memref<53x128xf32, #tpu.memory_space<vmem>>, %arg5: memref<8x128xf32, #tpu.memory_space<vmem>>) attributes {dimension_semantics = [#tpu.dimension_semantics<arbitrary>], iteration_bounds = array<i64: 1>, scalar_prefetch = 1 : i64, scratch_operands = 0 : i64, tpu.core_type = #tpu.core_type<tc>, window_params = [{pipeline_mode = #tpu.pipeline_mode<synchronous>, transform_indices = @transform_0, window_bounds = array<i64: 1, 128>}, {pipeline_mode = #tpu.pipeline_mode<synchronous>, transform_indices = @transform_1, window_bounds = array<i64: 3, 128, 128>}, {pipeline_mode = #tpu.pipeline_mode<synchronous>, transform_indices = @transform_2, window_bounds = array<i64: 53, 128>}, {pipeline_mode = #tpu.pipeline_mode<synchronous>, transform_indices = @transform_3, window_bounds = array<i64: 8, 128>}]} {
    %c0 = arith.constant 0 : index
    %0 = memref.load %arg1[%c0] : memref<8xi32, #tpu.memory_space<smem>>
    %c2_i32 = arith.constant 2 : i32
    %1 = arith.addi %c2_i32, %0 : i32
    %2 = arith.index_cast %1 : i32 to index
    %c0_0 = arith.constant 0 : index
    %3 = vector.load %arg4[%2, %c0_0] : memref<53x128xf32, #tpu.memory_space<vmem>>, vector<1x128xf32>
    %c1 = arith.constant 1 : index
    %4 = memref.load %arg1[%c1] : memref<8xi32, #tpu.memory_space<smem>>
    %c2_i32_1 = arith.constant 2 : i32
    %5 = arith.addi %c2_i32_1, %4 : i32
    %6 = arith.index_cast %5 : i32 to index
    %c0_2 = arith.constant 0 : index
    %7 = vector.load %arg4[%6, %c0_2] : memref<53x128xf32, #tpu.memory_space<vmem>>, vector<1x128xf32>
    %c2 = arith.constant 2 : index
    %8 = memref.load %arg1[%c2] : memref<8xi32, #tpu.memory_space<smem>>
    %c2_i32_3 = arith.constant 2 : i32
    %9 = arith.addi %c2_i32_3, %8 : i32
    %10 = arith.index_cast %9 : i32 to index
    %c0_4 = arith.constant 0 : index
    %11 = vector.load %arg4[%10, %c0_4] : memref<53x128xf32, #tpu.memory_space<vmem>>, vector<1x128xf32>
    %c3 = arith.constant 3 : index
    %12 = memref.load %arg1[%c3] : memref<8xi32, #tpu.memory_space<smem>>
    %c2_i32_5 = arith.constant 2 : i32
    %13 = arith.addi %c2_i32_5, %12 : i32
    %14 = arith.index_cast %13 : i32 to index
    %c0_6 = arith.constant 0 : index
    %15 = vector.load %arg4[%14, %c0_6] : memref<53x128xf32, #tpu.memory_space<vmem>>, vector<1x128xf32>
    %c4 = arith.constant 4 : index
    %16 = memref.load %arg1[%c4] : memref<8xi32, #tpu.memory_space<smem>>
    %c2_i32_7 = arith.constant 2 : i32
    %17 = arith.addi %c2_i32_7, %16 : i32
    %18 = arith.index_cast %17 : i32 to index
    %c0_8 = arith.constant 0 : index
    %19 = vector.load %arg4[%18, %c0_8] : memref<53x128xf32, #tpu.memory_space<vmem>>, vector<1x128xf32>
    %c5 = arith.constant 5 : index
    %20 = memref.load %arg1[%c5] : memref<8xi32, #tpu.memory_space<smem>>
    %c2_i32_9 = arith.constant 2 : i32
    %21 = arith.addi %c2_i32_9, %20 : i32
    %22 = arith.index_cast %21 : i32 to index
    %c0_10 = arith.constant 0 : index
    %23 = vector.load %arg4[%22, %c0_10] : memref<53x128xf32, #tpu.memory_space<vmem>>, vector<1x128xf32>
    %c6 = arith.constant 6 : index
    %24 = memref.load %arg1[%c6] : memref<8xi32, #tpu.memory_space<smem>>
    %c2_i32_11 = arith.constant 2 : i32
    %25 = arith.addi %c2_i32_11, %24 : i32
    %26 = arith.index_cast %25 : i32 to index
    %c0_12 = arith.constant 0 : index
    %27 = vector.load %arg4[%26, %c0_12] : memref<53x128xf32, #tpu.memory_space<vmem>>, vector<1x128xf32>
    %c7 = arith.constant 7 : index
    %28 = memref.load %arg1[%c7] : memref<8xi32, #tpu.memory_space<smem>>
    %c2_i32_13 = arith.constant 2 : i32
    %29 = arith.addi %c2_i32_13, %28 : i32
    %30 = arith.index_cast %29 : i32 to index
    %c0_14 = arith.constant 0 : index
    %31 = vector.load %arg4[%30, %c0_14] : memref<53x128xf32, #tpu.memory_space<vmem>>, vector<1x128xf32>
    %32 = tpu.concatenate %3, %7, %11, %15, %19, %23, %27, %31 in 0 : vector<1x128xf32>, vector<1x128xf32>, vector<1x128xf32>, vector<1x128xf32>, vector<1x128xf32>, vector<1x128xf32>, vector<1x128xf32>, vector<1x128xf32> -> vector<8x128xf32>
    %33 = arith.truncf %32 : vector<8x128xf32> to vector<8x128xbf16>
    %c0_15 = arith.constant 0 : index
    %c0_16 = arith.constant 0 : index
    %c0_17 = arith.constant 0 : index
    %34 = vector.load %arg3[%c0_15, %c0_16, %c0_17] : memref<3x128x128xbf16, #tpu.memory_space<vmem>>, vector<1x128x128xbf16>
    %35 = vector.shape_cast %34 : vector<1x128x128xbf16> to vector<128x128xbf16>
    %c1_18 = arith.constant 1 : index
    %c0_19 = arith.constant 0 : index
    %c0_20 = arith.constant 0 : index
    %36 = vector.load %arg3[%c1_18, %c0_19, %c0_20] : memref<3x128x128xbf16, #tpu.memory_space<vmem>>, vector<1x128x128xbf16>
    %37 = vector.shape_cast %36 : vector<1x128x128xbf16> to vector<128x128xbf16>
    %c2_21 = arith.constant 2 : index
    %c0_22 = arith.constant 0 : index
    %c0_23 = arith.constant 0 : index
    %38 = vector.load %arg3[%c2_21, %c0_22, %c0_23] : memref<3x128x128xbf16, #tpu.memory_space<vmem>>, vector<1x128x128xbf16>
    %39 = vector.shape_cast %38 : vector<1x128x128xbf16> to vector<128x128xbf16>
    %c0_24 = arith.constant 0 : index
    %c0_25 = arith.constant 0 : index
    %40 = vector.load %arg4[%c0_24, %c0_25] : memref<53x128xf32, #tpu.memory_space<vmem>>, vector<1x128xf32>
    %c1_26 = arith.constant 1 : index
    %c0_27 = arith.constant 0 : index
    %41 = vector.load %arg4[%c1_26, %c0_27] : memref<53x128xf32, #tpu.memory_space<vmem>>, vector<1x128xf32>
    %cst = arith.constant dense<0.000000e+00> : vector<8x128xf32>
    %42 = tpu.matmul %33, %35, %cst {dimension_numbers = #tpu.dot_dimension_numbers<[1], [0], [0], [1], [0, 0, 1, 1], [], []>} : vector<8x128xbf16>, vector<128x128xbf16>, vector<8x128xf32> -> vector<8x128xf32>
    %43 = tpu.iota {dimensions = array<i32: 1>} : vector<1x128xi32>
    %c0_28 = arith.constant 0 : index
    %c0_29 = arith.constant 0 : index
    %44 = vector.load %arg2[%c0_28, %c0_29] : memref<1x128xf32, #tpu.memory_space<vmem>>, vector<1x128xf32>
    %45 = arith.truncf %44 : vector<1x128xf32> to vector<1x128xbf16>
    %cst_30 = arith.constant dense<0.000000e+00> : vector<1x128xf32>
    %46 = tpu.matmul %45, %37, %cst_30 {dimension_numbers = #tpu.dot_dimension_numbers<[1], [0], [0], [1], [0, 0, 1, 1], [], []>} : vector<1x128xbf16>, vector<128x128xbf16>, vector<1x128xf32> -> vector<1x128xf32>
    %47 = arith.addf %46, %40 : vector<1x128xf32>
    %48 = vector.extract_strided_slice %42 {offsets = [0, 0], sizes = [1, 128], strides = [1, 1]} : vector<8x128xf32> to vector<1x128xf32>
    %49 = arith.addf %47, %48 : vector<1x128xf32>
    %50 = math.tanh %49 : vector<1x128xf32>
    %c0_i32 = arith.constant 0 : i32
    %51 = vector.broadcast %c0_i32 : i32 to vector<1x128xi32>
    %52 = arith.cmpi sge, %43, %51 : vector<1x128xi32>
    %c32_i32 = arith.constant 32 : i32
    %53 = vector.broadcast %c32_i32 : i32 to vector<1x128xi32>
    %54 = arith.cmpi slt, %43, %53 : vector<1x128xi32>
    %55 = arith.andi %52, %54 : vector<1x128xi1>
    %56 = arith.select %55, %50, %44 : vector<1x128xi1>, vector<1x128xf32>
    %57 = arith.truncf %56 : vector<1x128xf32> to vector<1x128xbf16>
    %cst_31 = arith.constant dense<0.000000e+00> : vector<1x128xf32>
    %58 = tpu.matmul %57, %37, %cst_31 {dimension_numbers = #tpu.dot_dimension_numbers<[1], [0], [0], [1], [0, 0, 1, 1], [], []>} : vector<1x128xbf16>, vector<128x128xbf16>, vector<1x128xf32> -> vector<1x128xf32>
    %59 = arith.addf %58, %40 : vector<1x128xf32>
    %60 = vector.extract_strided_slice %42 {offsets = [1, 0], sizes = [1, 128], strides = [1, 1]} : vector<8x128xf32> to vector<1x128xf32>
    %61 = arith.addf %59, %60 : vector<1x128xf32>
    %62 = math.tanh %61 : vector<1x128xf32>
    %c0_i32_32 = arith.constant 0 : i32
    %63 = vector.broadcast %c0_i32_32 : i32 to vector<1x128xi32>
    %64 = arith.cmpi sge, %43, %63 : vector<1x128xi32>
    %c64_i32 = arith.constant 64 : i32
    %65 = vector.broadcast %c64_i32 : i32 to vector<1x128xi32>
    %66 = arith.cmpi slt, %43, %65 : vector<1x128xi32>
    %67 = arith.andi %64, %66 : vector<1x128xi1>
    %68 = arith.select %67, %62, %56 : vector<1x128xi1>, vector<1x128xf32>
    %69 = arith.truncf %68 : vector<1x128xf32> to vector<1x128xbf16>
    %cst_33 = arith.constant dense<0.000000e+00> : vector<1x128xf32>
    %70 = tpu.matmul %69, %37, %cst_33 {dimension_numbers = #tpu.dot_dimension_numbers<[1], [0], [0], [1], [0, 0, 1, 1], [], []>} : vector<1x128xbf16>, vector<128x128xbf16>, vector<1x128xf32> -> vector<1x128xf32>
    %71 = arith.addf %70, %40 : vector<1x128xf32>
    %72 = vector.extract_strided_slice %42 {offsets = [2, 0], sizes = [1, 128], strides = [1, 1]} : vector<8x128xf32> to vector<1x128xf32>
    %73 = arith.addf %71, %72 : vector<1x128xf32>
    %74 = math.tanh %73 : vector<1x128xf32>
    %75 = arith.truncf %74 : vector<1x128xf32> to vector<1x128xbf16>
    %cst_34 = arith.constant dense<0.000000e+00> : vector<1x128xf32>
    %76 = tpu.matmul %75, %37, %cst_34 {dimension_numbers = #tpu.dot_dimension_numbers<[1], [0], [0], [1], [0, 0, 1, 1], [], []>} : vector<1x128xbf16>, vector<128x128xbf16>, vector<1x128xf32> -> vector<1x128xf32>
    %77 = arith.addf %76, %40 : vector<1x128xf32>
    %78 = vector.extract_strided_slice %42 {offsets = [3, 0], sizes = [1, 128], strides = [1, 1]} : vector<8x128xf32> to vector<1x128xf32>
    %79 = arith.addf %77, %78 : vector<1x128xf32>
    %80 = math.tanh %79 : vector<1x128xf32>
    %81 = arith.truncf %80 : vector<1x128xf32> to vector<1x128xbf16>
    %cst_35 = arith.constant dense<0.000000e+00> : vector<1x128xf32>
    %82 = tpu.matmul %81, %37, %cst_35 {dimension_numbers = #tpu.dot_dimension_numbers<[1], [0], [0], [1], [0, 0, 1, 1], [], []>} : vector<1x128xbf16>, vector<128x128xbf16>, vector<1x128xf32> -> vector<1x128xf32>
    %83 = arith.addf %82, %40 : vector<1x128xf32>
    %84 = vector.extract_strided_slice %42 {offsets = [4, 0], sizes = [1, 128], strides = [1, 1]} : vector<8x128xf32> to vector<1x128xf32>
    %85 = arith.addf %83, %84 : vector<1x128xf32>
    %86 = math.tanh %85 : vector<1x128xf32>
    %87 = arith.truncf %86 : vector<1x128xf32> to vector<1x128xbf16>
    %cst_36 = arith.constant dense<0.000000e+00> : vector<1x128xf32>
    %88 = tpu.matmul %87, %37, %cst_36 {dimension_numbers = #tpu.dot_dimension_numbers<[1], [0], [0], [1], [0, 0, 1, 1], [], []>} : vector<1x128xbf16>, vector<128x128xbf16>, vector<1x128xf32> -> vector<1x128xf32>
    %89 = arith.addf %88, %40 : vector<1x128xf32>
    %90 = vector.extract_strided_slice %42 {offsets = [5, 0], sizes = [1, 128], strides = [1, 1]} : vector<8x128xf32> to vector<1x128xf32>
    %91 = arith.addf %89, %90 : vector<1x128xf32>
    %92 = math.tanh %91 : vector<1x128xf32>
    %93 = arith.truncf %92 : vector<1x128xf32> to vector<1x128xbf16>
    %cst_37 = arith.constant dense<0.000000e+00> : vector<1x128xf32>
    %94 = tpu.matmul %93, %37, %cst_37 {dimension_numbers = #tpu.dot_dimension_numbers<[1], [0], [0], [1], [0, 0, 1, 1], [], []>} : vector<1x128xbf16>, vector<128x128xbf16>, vector<1x128xf32> -> vector<1x128xf32>
    %95 = arith.addf %94, %40 : vector<1x128xf32>
    %96 = vector.extract_strided_slice %42 {offsets = [6, 0], sizes = [1, 128], strides = [1, 1]} : vector<8x128xf32> to vector<1x128xf32>
    %97 = arith.addf %95, %96 : vector<1x128xf32>
    %98 = math.tanh %97 : vector<1x128xf32>
    %99 = arith.truncf %98 : vector<1x128xf32> to vector<1x128xbf16>
    %cst_38 = arith.constant dense<0.000000e+00> : vector<1x128xf32>
    %100 = tpu.matmul %99, %37, %cst_38 {dimension_numbers = #tpu.dot_dimension_numbers<[1], [0], [0], [1], [0, 0, 1, 1], [], []>} : vector<1x128xbf16>, vector<128x128xbf16>, vector<1x128xf32> -> vector<1x128xf32>
    %101 = arith.addf %100, %40 : vector<1x128xf32>
    %102 = vector.extract_strided_slice %42 {offsets = [7, 0], sizes = [1, 128], strides = [1, 1]} : vector<8x128xf32> to vector<1x128xf32>
    %103 = arith.addf %101, %102 : vector<1x128xf32>
    %104 = math.tanh %103 : vector<1x128xf32>
    %105 = arith.truncf %104 : vector<1x128xf32> to vector<1x128xbf16>
    %cst_39 = arith.constant dense<0.000000e+00> : vector<1x128xf32>
    %106 = tpu.matmul %105, %37, %cst_39 {dimension_numbers = #tpu.dot_dimension_numbers<[1], [0], [0], [1], [0, 0, 1, 1], [], []>} : vector<1x128xbf16>, vector<128x128xbf16>, vector<1x128xf32> -> vector<1x128xf32>
    %107 = arith.addf %106, %40 : vector<1x128xf32>
    %108 = math.tanh %107 : vector<1x128xf32>
    %c32_i32_40 = arith.constant 32 : i32
    %109 = vector.broadcast %c32_i32_40 : i32 to vector<1x128xi32>
    %110 = arith.cmpi sge, %43, %109 : vector<1x128xi32>
    %c96_i32 = arith.constant 96 : i32
    %111 = vector.broadcast %c96_i32 : i32 to vector<1x128xi32>
    %112 = arith.cmpi slt, %43, %111 : vector<1x128xi32>
    %113 = arith.andi %110, %112 : vector<1x128xi1>
    %114 = arith.select %113, %108, %104 : vector<1x128xi1>, vector<1x128xf32>
    %115 = arith.truncf %114 : vector<1x128xf32> to vector<1x128xbf16>
    %cst_41 = arith.constant dense<0.000000e+00> : vector<1x128xf32>
    %116 = tpu.matmul %115, %37, %cst_41 {dimension_numbers = #tpu.dot_dimension_numbers<[1], [0], [0], [1], [0, 0, 1, 1], [], []>} : vector<1x128xbf16>, vector<128x128xbf16>, vector<1x128xf32> -> vector<1x128xf32>
    %117 = arith.addf %116, %40 : vector<1x128xf32>
    %118 = math.tanh %117 : vector<1x128xf32>
    %c64_i32_42 = arith.constant 64 : i32
    %119 = vector.broadcast %c64_i32_42 : i32 to vector<1x128xi32>
    %120 = arith.cmpi sge, %43, %119 : vector<1x128xi32>
    %c96_i32_43 = arith.constant 96 : i32
    %121 = vector.broadcast %c96_i32_43 : i32 to vector<1x128xi32>
    %122 = arith.cmpi slt, %43, %121 : vector<1x128xi32>
    %123 = arith.andi %120, %122 : vector<1x128xi1>
    %124 = arith.select %123, %118, %114 : vector<1x128xi1>, vector<1x128xf32>
    %125 = tpu.concatenate %74, %80, %86, %92, %98, %104, %114, %124 in 0 : vector<1x128xf32>, vector<1x128xf32>, vector<1x128xf32>, vector<1x128xf32>, vector<1x128xf32>, vector<1x128xf32>, vector<1x128xf32>, vector<1x128xf32> -> vector<8x128xf32>
    %126 = arith.truncf %125 : vector<8x128xf32> to vector<8x128xbf16>
    %cst_44 = arith.constant dense<0.000000e+00> : vector<8x128xf32>
    %127 = tpu.matmul %126, %39, %cst_44 {dimension_numbers = #tpu.dot_dimension_numbers<[1], [0], [0], [1], [0, 0, 1, 1], [], []>} : vector<8x128xbf16>, vector<128x128xbf16>, vector<8x128xf32> -> vector<8x128xf32>
    %128 = vector.broadcast %41 : vector<1x128xf32> to vector<8x128xf32>
    %129 = arith.addf %127, %128 : vector<8x128xf32>
    %cst_45 = arith.constant 0.000000e+00 : f32
    %130 = vector.broadcast %cst_45 : f32 to vector<8x128xf32>
    %131 = arith.maximumf %129, %130 : vector<8x128xf32>
    %c0_46 = arith.constant 0 : index
    %c0_47 = arith.constant 0 : index
    %132 = vector.load %arg5[%c0_46, %c0_47] : memref<8x128xf32, #tpu.memory_space<vmem>>, vector<8x128xf32>
    tpu.vector_store %arg5[%c0_46, %c0_47], %131 {strides = array<i32>} : memref<8x128xf32, #tpu.memory_space<vmem>>, vector<8x128xf32>,
    return
  }
  func.func @transform_0(%arg0: i32, %arg1: memref<8xi32, #tpu.memory_space<smem>>) -> (i32, i32) {
    %c0_i32 = arith.constant 0 : i32
    %c0_i32_0 = arith.constant 0 : i32
    %c0_i32_1 = arith.constant 0 : i32
    return %c0_i32, %c0_i32_0 : i32, i32
  }
  func.func @transform_1(%arg0: i32, %arg1: memref<8xi32, #tpu.memory_space<smem>>) -> (i32, i32, i32) {
    %c0_i32 = arith.constant 0 : i32
    %c0_i32_0 = arith.constant 0 : i32
    %c0_i32_1 = arith.constant 0 : i32
    %c0_i32_2 = arith.constant 0 : i32
    return %c0_i32, %c0_i32_0, %c0_i32_1 : i32, i32, i32
  }
  func.func @transform_2(%arg0: i32, %arg1: memref<8xi32, #tpu.memory_space<smem>>) -> (i32, i32) {
    %c0_i32 = arith.constant 0 : i32
    %c0_i32_0 = arith.constant 0 : i32
    %c0_i32_1 = arith.constant 0 : i32
    return %c0_i32, %c0_i32_0 : i32, i32
  }
  func.func @transform_3(%arg0: i32, %arg1: memref<8xi32, #tpu.memory_space<smem>>) -> (i32, i32) {
    %c0_i32 = arith.constant 0 : i32
    %c0_i32_0 = arith.constant 0 : i32
    %c0_i32_1 = arith.constant 0 : i32
    return %c0_i32, %c0_i32_0 : i32, i32
  }
}

</mosaic_0001>

<llo_original>
// kernel: rnn_model_forward.1
$region0: #{rnn_model_forward.1}
  #allocation0 [shape = 'u32[]', space=smem, size = 0x4, offset = 0x4, fixed_abs, tag = 'smem constant byte address 0x4 - core index']
  #allocation1 [shape = 'u32[144,128]{1,0:T(1,128)}', space=vmem, size = 0x12000, scoped, tag = 'internal scratch']
  #allocation2 [shape = 's32[1]{0}', space=sflag, size = 0x4, scoped, tag = 'scoped memory for rnn_model_forward.1']
  #allocation3 [shape = 'u8[512]{0}', space=smem, size = 0x200, scoped, tag = 'prefetched SMEM operand 0']
  %s0 = inlined_call_operand.vmem [shape: s32[8], index: 0, kind: input, shape index: {}]
  %s1 = inlined_call_operand.vmem [shape: f32[1,128], index: 1, kind: input, shape index: {}]
  %s2 = inlined_call_operand.hbm [shape: bf16[3,128,128], index: 2, kind: input, shape index: {}]
  %s3 = inlined_call_operand.hbm [shape: f32[53,128], index: 3, kind: input, shape index: {}]
  %s4 = inlined_call_operand.hbm [shape: f32[8,128], index: 4, kind: output, shape index: {}]
  %s5 = sld [smem:[#allocation0]]
  $region30: #{rnn_model_forward.1} parent=0
    _
  %s7 = ssub.s32 1, %s5
  %s8 = scalar_select 0, %s7, %s5
  %s9 = sshll.u32 %s0, 4
  %s10 = int_to_ptr.vmem [resolvable:$true] %s9
  %12 = dma.vmem_to_smem %s10, 16, [#allocation3], [#allocation2]
  %13 = dma.done [#allocation2], 16
  %14 = sfence
  $region1: #{rnn_model_forward.1} parent=0
    #allocation4 [shape = 'u8[98304]{0}', space=vmem, size = 0x18000, scoped, tag = 'input window, operand 2, single buffered']
    #allocation5 [shape = 's32[1]{0}', space=sflag, size = 0x4, scoped, tag = 'scoped memory for rnn_model_forward.1']
    #allocation6 [shape = 's32[1]{0}', space=sflag, size = 0x4, scoped, tag = 'scoped memory for rnn_model_forward.1']
    #allocation7 [shape = 'u8[28672]{0}', space=vmem, size = 0x7000, scoped, tag = 'input window, operand 3, single buffered']
    #allocation8 [shape = 's32[1]{0}', space=sflag, size = 0x4, scoped, tag = 'scoped memory for rnn_model_forward.1']
    #allocation9 [shape = 'u8[4096]{0}', space=vmem, size = 0x1000, scoped, tag = 'output window, operand 0, single buffered']
    %15 = vsyncpa [#allocation5], 0
    %16 = vsyncpa [#allocation8], 0
    %17 = vsyncpa [#allocation6], 0
    // Predicated region
    $region2: #{rnn_model_forward.1} parent=1 // pred_check
      _
    $region3: #{rnn_model_forward.1} parent=1 // pred_check_branch
      %19 = sbr.rel (0) target = $region5
    $region4: #{rnn_model_forward.1} parent=1 // pred_region
      _
    $region5: #{rnn_model_forward.1} parent=1 // pred_fallthru
      _
    // Predicated region
    $region6: #{rnn_model_forward.1} parent=1 // pred_check
      _
    $region7: #{rnn_model_forward.1} parent=1 // pred_check_branch
      %21 = sbr.rel (0) target = $region9
    $region8: #{rnn_model_forward.1} parent=1 // pred_region
      %s23 = ssub.s32 3072, 3072
      %24 = vsyncadd [#allocation5], %s23
      %s25 = sshll.u32 [#allocation4], 4
      %s26 = int_to_ptr.vmem [resolvable:$true] %s25
      %31 = dma.hbm_to_vmem [thread:$0]  %s2, 3072, %s26, [#allocation5], 64, 64, 4
    $region9: #{rnn_model_forward.1} parent=1 // pred_fallthru
      _
    // Predicated region
    $region10: #{rnn_model_forward.1} parent=1 // pred_check
      _
    $region11: #{rnn_model_forward.1} parent=1 // pred_check_branch
      %33 = sbr.rel (0) target = $region13
    $region12: #{rnn_model_forward.1} parent=1 // pred_region
      %s35 = ssub.s32 896, 896
      %36 = vsyncadd [#allocation8], %s35
      %s37 = sshll.u32 [#allocation7], 4
      %s38 = int_to_ptr.vmem [resolvable:$true] %s37
      %43 = dma.hbm_to_vmem [thread:$0]  %s3, 896, %s38, [#allocation8], 128, 128, 8
    $region13: #{rnn_model_forward.1} parent=1 // pred_fallthru
      _
    // Predicated region
    $region14: #{rnn_model_forward.1} parent=1 // pred_check
      _
    $region15: #{rnn_model_forward.1} parent=1 // pred_check_branch
      %45 = sbr.rel (0) target = $region17
    $region16: #{rnn_model_forward.1} parent=1 // pred_region
      %46 = dma.done [#allocation5], 3072
    $region17: #{rnn_model_forward.1} parent=1 // pred_fallthru
      _
    // Predicated region
    $region18: #{rnn_model_forward.1} parent=1 // pred_check
      _
    $region19: #{rnn_model_forward.1} parent=1 // pred_check_branch
      %48 = sbr.rel (0) target = $region21
    $region20: #{rnn_model_forward.1} parent=1 // pred_region
      %49 = dma.done [#allocation8], 896
    $region21: #{rnn_model_forward.1} parent=1 // pred_fallthru
      _
    %s51 = sld [smem:[#allocation3]]
    %s52 = sadd.s32 %s51, 2
    %s53 = scalar_lea.vmem [#allocation7], %s52
    %v54 = vld [vmem:[%s53] sm:$0x1]
    %s55 = sld [smem:[#allocation3 + $0x1]]
    %s56 = sadd.s32 %s55, 2
    %s57 = scalar_lea.vmem [#allocation7], %s56
    %v58 = vld [vmem:[%s57] sm:$0x1]
    %s59 = sld [smem:[#allocation3 + $0x2]]
    %s60 = sadd.s32 %s59, 2
    %s61 = scalar_lea.vmem [#allocation7], %s60
    %v62 = vld [vmem:[%s61] sm:$0x1]
    %s63 = sld [smem:[#allocation3 + $0x3]]
    %s64 = sadd.s32 %s63, 2
    %s65 = scalar_lea.vmem [#allocation7], %s64
    %v66 = vld [vmem:[%s65] sm:$0x1]
    %s67 = sld [smem:[#allocation3 + $0x4]]
    %s68 = sadd.s32 %s67, 2
    %s69 = scalar_lea.vmem [#allocation7], %s68
    %v70 = vld [vmem:[%s69] sm:$0x1]
    %s71 = sld [smem:[#allocation3 + $0x5]]
    %s72 = sadd.s32 %s71, 2
    %s73 = scalar_lea.vmem [#allocation7], %s72
    %v74 = vld [vmem:[%s73] sm:$0x1]
    %s75 = sld [smem:[#allocation3 + $0x6]]
    %s76 = sadd.s32 %s75, 2
    %s77 = scalar_lea.vmem [#allocation7], %s76
    %v78 = vld [vmem:[%s77] sm:$0x1]
    %s79 = sld [smem:[#allocation3 + $0x7]]
    %s80 = sadd.s32 %s79, 2
    %s81 = scalar_lea.vmem [#allocation7], %s80
    %v82 = vld [vmem:[%s81] sm:$0x1]
    %v84 = vrot.slane %v58, 7
    %v87 = vrot.slane %v62, 6
    %v90 = vrot.slane %v66, 5
    %v93 = vrot.slane %v70, 4
    %v96 = vrot.slane %v74, 3
    %v99 = vrot.slane %v78, 2
    %v102 = vrot.slane %v82, 1
    %vm104 = vcmask 1040384
    %v105 = vsel %vm104, %v54, %v84
    %vm106 = vcmask 1041408
    %v107 = vsel %vm106, %v105, %v87
    %vm108 = vcmask 1042432
    %v109 = vsel %vm108, %v107, %v90
    %vm110 = vcmask 1043456
    %v111 = vsel %vm110, %v109, %v93
    %vm112 = vcmask 1044480
    %v113 = vsel %vm112, %v111, %v96
    %vm114 = vcmask 1045504
    %v115 = vsel %vm114, %v113, %v99
    %vm116 = vcmask 1046528
    %v117 = vsel %vm116, %v115, %v102
    %v118 = vpack.c.bf16 %v117, %v117
    %v119 = vld [vmem:[#allocation4] sm:$0xf]
    %v120 = vld [vmem:[#allocation4 + $0x4] sm:$0xf]
    %v121 = vld [vmem:[#allocation4 + $0x8] sm:$0xf]
    %v122 = vld [vmem:[#allocation4 + $0xc] sm:$0xf]
    %v123 = vld [vmem:[#allocation4 + $0x10] sm:$0xf]
    %v124 = vld [vmem:[#allocation4 + $0x14] sm:$0xf]
    %v125 = vld [vmem:[#allocation4 + $0x18] sm:$0xf]
    %v126 = vld [vmem:[#allocation4 + $0x1c] sm:$0xf]
    %v127 = vld [vmem:[#allocation4 + $0x20] sm:$0xf]
    %v128 = vld [vmem:[#allocation4 + $0x24] sm:$0xf]
    %v129 = vld [vmem:[#allocation4 + $0x28] sm:$0xf]
    %v130 = vld [vmem:[#allocation4 + $0x2c] sm:$0xf]
    %v131 = vld [vmem:[#allocation4 + $0x30] sm:$0xf]
    %v132 = vld [vmem:[#allocation4 + $0x34] sm:$0xf]
    %v133 = vld [vmem:[#allocation4 + $0x38] sm:$0xf]
    %v134 = vld [vmem:[#allocation4 + $0x3c] sm:$0xf]
    %s135 = scalar_lea.vmem [#allocation4], 64
    %v136 = vld [vmem:[%s135] sm:$0xf]
    %v137 = vld [vmem:[%s135 + $0x4] sm:$0xf]
    %v138 = vld [vmem:[%s135 + $0x8] sm:$0xf]
    %v139 = vld [vmem:[%s135 + $0xc] sm:$0xf]
    %v140 = vld [vmem:[%s135 + $0x10] sm:$0xf]
    %v141 = vld [vmem:[%s135 + $0x14] sm:$0xf]
    %v142 = vld [vmem:[%s135 + $0x18] sm:$0xf]
    %v143 = vld [vmem:[%s135 + $0x1c] sm:$0xf]
    %v144 = vld [vmem:[%s135 + $0x20] sm:$0xf]
    %v145 = vld [vmem:[%s135 + $0x24] sm:$0xf]
    %v146 = vld [vmem:[%s135 + $0x28] sm:$0xf]
    %v147 = vld [vmem:[%s135 + $0x2c] sm:$0xf]
    %v148 = vld [vmem:[%s135 + $0x30] sm:$0xf]
    %v149 = vld [vmem:[%s135 + $0x34] sm:$0xf]
    %v150 = vld [vmem:[%s135 + $0x38] sm:$0xf]
    %v151 = vld [vmem:[%s135 + $0x3c] sm:$0xf]
    %s152 = scalar_lea.vmem [#allocation4], 128
    %v153 = vld [vmem:[%s152] sm:$0xf]
    %v154 = vld [vmem:[%s152 + $0x4] sm:$0xf]
    %v155 = vld [vmem:[%s152 + $0x8] sm:$0xf]
    %v156 = vld [vmem:[%s152 + $0xc] sm:$0xf]
    %v157 = vld [vmem:[%s152 + $0x10] sm:$0xf]
    %v158 = vld [vmem:[%s152 + $0x14] sm:$0xf]
    %v159 = vld [vmem:[%s152 + $0x18] sm:$0xf]
    %v160 = vld [vmem:[%s152 + $0x1c] sm:$0xf]
    %v161 = vld [vmem:[%s152 + $0x20] sm:$0xf]
    %v162 = vld [vmem:[%s152 + $0x24] sm:$0xf]
    %v163 = vld [vmem:[%s152 + $0x28] sm:$0xf]
    %v164 = vld [vmem:[%s152 + $0x2c] sm:$0xf]
    %v165 = vld [vmem:[%s152 + $0x30] sm:$0xf]
    %v166 = vld [vmem:[%s152 + $0x34] sm:$0xf]
    %v167 = vld [vmem:[%s152 + $0x38] sm:$0xf]
    %v168 = vld [vmem:[%s152 + $0x3c] sm:$0xf]
    %v169 = vld [vmem:[#allocation7] sm:$0x1]
    %v170 = vld [vmem:[#allocation7 + $0x1] sm:$0x1]
    %v187 = vunpack.c.l.b16 %v119
    %v188 = vunpack.c.l.b16 %v120
    %v189 = vunpack.c.l.b16 %v121
    %v190 = vunpack.c.l.b16 %v122
    %v191 = vunpack.c.l.b16 %v123
    %v192 = vunpack.c.l.b16 %v124
    %v193 = vunpack.c.l.b16 %v125
    %v194 = vunpack.c.l.b16 %v126
    %v195 = vunpack.c.l.b16 %v127
    %v196 = vunpack.c.l.b16 %v128
    %v197 = vunpack.c.l.b16 %v129
    %v198 = vunpack.c.l.b16 %v130
    %v199 = vunpack.c.l.b16 %v131
    %v200 = vunpack.c.l.b16 %v132
    %v201 = vunpack.c.l.b16 %v133
    %v202 = vunpack.c.l.b16 %v134
    %v203 = vpack.c.b16 %v188, %v187
    %v204 = vpack.c.b16 %v190, %v189
    %v205 = vpack.c.b16 %v192, %v191
    %v206 = vpack.c.b16 %v194, %v193
    %v207 = vpack.c.b16 %v196, %v195
    %v208 = vpack.c.b16 %v198, %v197
    %v209 = vpack.c.b16 %v200, %v199
    %v210 = vpack.c.b16 %v202, %v201
    %219 = vmatprep.subr.bf16.mxu0 0
    %220 = vmatpush1.bf16.msra.mxu0 %v210
    %221 = vmatprep.subr.bf16.mxu0 0
    %222 = vmatpush1.bf16.msra.mxu0 %v209
    %223 = vmatprep.subr.bf16.mxu0 0
    %224 = vmatpush1.bf16.msra.mxu0 %v208
    %225 = vmatprep.subr.bf16.mxu0 0
    %226 = vmatpush1.bf16.msra.mxu0 %v207
    %227 = vmatprep.subr.bf16.mxu0 0
    %228 = vmatpush1.bf16.msra.mxu0 %v206
    %229 = vmatprep.subr.bf16.mxu0 0
    %230 = vmatpush1.bf16.msra.mxu0 %v205
    %231 = vmatprep.subr.bf16.mxu0 0
    %232 = vmatpush1.bf16.msra.mxu0 %v204
    %233 = vmatprep.subr.bf16.mxu0 0
    %234 = vmatpush1.bf16.msra.mxu0 %v203
    %235 = vmatprep.subr.bf16.mxu0 0
    %236 = vmatpush2.bf16.msra.mxu0 0
    %237 = vmatprep.subr.bf16.mxu0 0
    %238 = vmatpush2.bf16.msra.mxu0 0
    %239 = vmatprep.subr.bf16.mxu0 0
    %240 = vmatpush2.bf16.msra.mxu0 0
    %241 = vmatprep.subr.bf16.mxu0 0
    %242 = vmatpush2.bf16.msra.mxu0 0
    %243 = vmatprep.subr.bf16.mxu0 0
    %244 = vmatpush2.bf16.msra.mxu0 0
    %245 = vmatprep.subr.bf16.mxu0 0
    %246 = vmatpush2.bf16.msra.mxu0 0
    %247 = vmatprep.subr.bf16.mxu0 0
    %248 = vmatpush2.bf16.msra.mxu0 0
    %249 = vmatprep.subr.bf16.mxu0 0
    %250 = vmatpush2.bf16.msra.mxu0 0
    %251 = vmatprep.mubr.bf16.mxu0 0
    %252 = vmatmul.mubr.bf16.gmra.mxu0 %v118
    %v253 = vpop.f32.mrf.mxu0
    %v254 = vadd.f32 0.0, %v253
    %v255 = vpop.f32.mrf.mxu0
    %v256 = vpop.f32.mrf.mxu0
    %v257 = vpop.f32.mrf.mxu0
    %258 = vdwg.mxu0
    %v259 = vlaneseq
    %v260 = vand.u32 %v259, 127
    %v261 = vld [vmem:[%s1] sm:$0x1]
    %v262 = vpack.c.bf16 %v261, %v261
    %v279 = vunpack.c.l.b16 %v136
    %v280 = vunpack.c.l.b16 %v137
    %v281 = vunpack.c.l.b16 %v138
    %v282 = vunpack.c.l.b16 %v139
    %v283 = vunpack.c.l.b16 %v140
    %v284 = vunpack.c.l.b16 %v141
    %v285 = vunpack.c.l.b16 %v142
    %v286 = vunpack.c.l.b16 %v143
    %v287 = vunpack.c.l.b16 %v144
    %v288 = vunpack.c.l.b16 %v145
    %v289 = vunpack.c.l.b16 %v146
    %v290 = vunpack.c.l.b16 %v147
    %v291 = vunpack.c.l.b16 %v148
    %v292 = vunpack.c.l.b16 %v149
    %v293 = vunpack.c.l.b16 %v150
    %v294 = vunpack.c.l.b16 %v151
    %v295 = vpack.c.b16 %v280, %v279
    %v296 = vpack.c.b16 %v282, %v281
    %v297 = vpack.c.b16 %v284, %v283
    %v298 = vpack.c.b16 %v286, %v285
    %v299 = vpack.c.b16 %v288, %v287
    %v300 = vpack.c.b16 %v290, %v289
    %v301 = vpack.c.b16 %v292, %v291
    %v302 = vpack.c.b16 %v294, %v293
    %311 = vmatprep.subr.bf16.mxu0 0
    %312 = vmatpush1.bf16.msra.mxu0 %v302
    %313 = vmatprep.subr.bf16.mxu0 0
    %314 = vmatpush1.bf16.msra.mxu0 %v301
    %315 = vmatprep.subr.bf16.mxu0 0
    %316 = vmatpush1.bf16.msra.mxu0 %v300
    %317 = vmatprep.subr.bf16.mxu0 0
    %318 = vmatpush1.bf16.msra.mxu0 %v299
    %319 = vmatprep.subr.bf16.mxu0 0
    %320 = vmatpush1.bf16.msra.mxu0 %v298
    %321 = vmatprep.subr.bf16.mxu0 0
    %322 = vmatpush1.bf16.msra.mxu0 %v297
    %323 = vmatprep.subr.bf16.mxu0 0
    %324 = vmatpush1.bf16.msra.mxu0 %v296
    %325 = vmatprep.subr.bf16.mxu0 0
    %326 = vmatpush1.bf16.msra.mxu0 %v295
    %327 = vmatprep.subr.bf16.mxu0 0
    %328 = vmatpush2.bf16.msra.mxu0 0
    %329 = vmatprep.subr.bf16.mxu0 0
    %330 = vmatpush2.bf16.msra.mxu0 0
    %331 = vmatprep.subr.bf16.mxu0 0
    %332 = vmatpush2.bf16.msra.mxu0 0
    %333 = vmatprep.subr.bf16.mxu0 0
    %334 = vmatpush2.bf16.msra.mxu0 0
    %335 = vmatprep.subr.bf16.mxu0 0
    %336 = vmatpush2.bf16.msra.mxu0 0
    %337 = vmatprep.subr.bf16.mxu0 0
    %338 = vmatpush2.bf16.msra.mxu0 0
    %339 = vmatprep.subr.bf16.mxu0 0
    %340 = vmatpush2.bf16.msra.mxu0 0
    %341 = vmatprep.subr.bf16.mxu0 0
    %342 = vmatpush2.bf16.msra.mxu0 0
    %343 = vmatprep.mubr.bf16.mxu0 0
    %344 = vmatmul.mubr.bf16.gmra.mxu0 %v262
    %v345 = vpop.f32.mrf.mxu0
    %v346 = vadd.f32 %v169, %v345
    %v347 = vpop.f32.mrf.mxu0
    %v348 = vpop.f32.mrf.mxu0
    %v349 = vpop.f32.mrf.mxu0
    %350 = vdwg.mxu0
    %v351 = vadd.f32 %v346, %v254
    %v352 = vtanh.pop %v351
    %vm353 = vcmp.ge.s32.totalorder %v260, 0
    %vm354 = vcmp.lt.s32.totalorder %v260, 32
    %vm355 = vmand %vm353, %vm354
    %v356 = vsel %vm355, %v352, %v261
    %v357 = vpack.c.bf16 %v356, %v356
    %358 = vmatprep.subr.bf16.mxu0 0
    %359 = vmatpush1.bf16.msra.mxu0 %v302
    %360 = vmatprep.subr.bf16.mxu0 0
    %361 = vmatpush1.bf16.msra.mxu0 %v301
    %362 = vmatprep.subr.bf16.mxu0 0
    %363 = vmatpush1.bf16.msra.mxu0 %v300
    %364 = vmatprep.subr.bf16.mxu0 0
    %365 = vmatpush1.bf16.msra.mxu0 %v299
    %366 = vmatprep.subr.bf16.mxu0 0
    %367 = vmatpush1.bf16.msra.mxu0 %v298
    %368 = vmatprep.subr.bf16.mxu0 0
    %369 = vmatpush1.bf16.msra.mxu0 %v297
    %370 = vmatprep.subr.bf16.mxu0 0
    %371 = vmatpush1.bf16.msra.mxu0 %v296
    %372 = vmatprep.subr.bf16.mxu0 0
    %373 = vmatpush1.bf16.msra.mxu0 %v295
    %374 = vmatprep.subr.bf16.mxu0 0
    %375 = vmatpush2.bf16.msra.mxu0 0
    %376 = vmatprep.subr.bf16.mxu0 0
    %377 = vmatpush2.bf16.msra.mxu0 0
    %378 = vmatprep.subr.bf16.mxu0 0
    %379 = vmatpush2.bf16.msra.mxu0 0
    %380 = vmatprep.subr.bf16.mxu0 0
    %381 = vmatpush2.bf16.msra.mxu0 0
    %382 = vmatprep.subr.bf16.mxu0 0
    %383 = vmatpush2.bf16.msra.mxu0 0
    %384 = vmatprep.subr.bf16.mxu0 0
    %385 = vmatpush2.bf16.msra.mxu0 0
    %386 = vmatprep.subr.bf16.mxu0 0
    %387 = vmatpush2.bf16.msra.mxu0 0
    %388 = vmatprep.subr.bf16.mxu0 0
    %389 = vmatpush2.bf16.msra.mxu0 0
    %390 = vmatprep.mubr.bf16.mxu0 0
    %391 = vmatmul.mubr.bf16.gmra.mxu0 %v357
    %v392 = vpop.f32.mrf.mxu0
    %v393 = vadd.f32 %v169, %v392
    %v394 = vpop.f32.mrf.mxu0
    %v395 = vpop.f32.mrf.mxu0
    %v396 = vpop.f32.mrf.mxu0
    %397 = vdwg.mxu0
    %v399 = vrot.slane %v254, 1
    %v401 = vadd.f32 %v393, %v399
    %v402 = vtanh.pop %v401
    %vm403 = vcmp.lt.s32.totalorder %v260, 64
    %vm404 = vmand %vm353, %vm403
    %v405 = vsel %vm404, %v402, %v356
    %v406 = vpack.c.bf16 %v405, %v405
    %407 = vmatprep.subr.bf16.mxu0 0
    %408 = vmatpush1.bf16.msra.mxu0 %v302
    %409 = vmatprep.subr.bf16.mxu0 0
    %410 = vmatpush1.bf16.msra.mxu0 %v301
    %411 = vmatprep.subr.bf16.mxu0 0
    %412 = vmatpush1.bf16.msra.mxu0 %v300
    %413 = vmatprep.subr.bf16.mxu0 0
    %414 = vmatpush1.bf16.msra.mxu0 %v299
    %415 = vmatprep.subr.bf16.mxu0 0
    %416 = vmatpush1.bf16.msra.mxu0 %v298
    %417 = vmatprep.subr.bf16.mxu0 0
    %418 = vmatpush1.bf16.msra.mxu0 %v297
    %419 = vmatprep.subr.bf16.mxu0 0
    %420 = vmatpush1.bf16.msra.mxu0 %v296
    %421 = vmatprep.subr.bf16.mxu0 0
    %422 = vmatpush1.bf16.msra.mxu0 %v295
    %423 = vmatprep.subr.bf16.mxu0 0
    %424 = vmatpush2.bf16.msra.mxu0 0
    %425 = vmatprep.subr.bf16.mxu0 0
    %426 = vmatpush2.bf16.msra.mxu0 0
    %427 = vmatprep.subr.bf16.mxu0 0
    %428 = vmatpush2.bf16.msra.mxu0 0
    %429 = vmatprep.subr.bf16.mxu0 0
    %430 = vmatpush2.bf16.msra.mxu0 0
    %431 = vmatprep.subr.bf16.mxu0 0
    %432 = vmatpush2.bf16.msra.mxu0 0
    %433 = vmatprep.subr.bf16.mxu0 0
    %434 = vmatpush2.bf16.msra.mxu0 0
    %435 = vmatprep.subr.bf16.mxu0 0
    %436 = vmatpush2.bf16.msra.mxu0 0
    %437 = vmatprep.subr.bf16.mxu0 0
    %438 = vmatpush2.bf16.msra.mxu0 0
    %439 = vmatprep.mubr.bf16.mxu0 0
    %440 = vmatmul.mubr.bf16.gmra.mxu0 %v406
    %v441 = vpop.f32.mrf.mxu0
    %v442 = vadd.f32 %v169, %v441
    %v443 = vpop.f32.mrf.mxu0
    %v444 = vpop.f32.mrf.mxu0
    %v445 = vpop.f32.mrf.mxu0
    %446 = vdwg.mxu0
    %v447 = vrot.slane %v254, 2
    %v449 = vadd.f32 %v442, %v447
    %v450 = vtanh.pop %v449
    %v451 = vpack.c.bf16 %v450, %v450
    %452 = vmatprep.subr.bf16.mxu0 0
    %453 = vmatpush1.bf16.msra.mxu0 %v302
    %454 = vmatprep.subr.bf16.mxu0 0
    %455 = vmatpush1.bf16.msra.mxu0 %v301
    %456 = vmatprep.subr.bf16.mxu0 0
    %457 = vmatpush1.bf16.msra.mxu0 %v300
    %458 = vmatprep.subr.bf16.mxu0 0
    %459 = vmatpush1.bf16.msra.mxu0 %v299
    %460 = vmatprep.subr.bf16.mxu0 0
    %461 = vmatpush1.bf16.msra.mxu0 %v298
    %462 = vmatprep.subr.bf16.mxu0 0
    %463 = vmatpush1.bf16.msra.mxu0 %v297
    %464 = vmatprep.subr.bf16.mxu0 0
    %465 = vmatpush1.bf16.msra.mxu0 %v296
    %466 = vmatprep.subr.bf16.mxu0 0
    %467 = vmatpush1.bf16.msra.mxu0 %v295
    %468 = vmatprep.subr.bf16.mxu0 0
    %469 = vmatpush2.bf16.msra.mxu0 0
    %470 = vmatprep.subr.bf16.mxu0 0
    %471 = vmatpush2.bf16.msra.mxu0 0
    %472 = vmatprep.subr.bf16.mxu0 0
    %473 = vmatpush2.bf16.msra.mxu0 0
    %474 = vmatprep.subr.bf16.mxu0 0
    %475 = vmatpush2.bf16.msra.mxu0 0
    %476 = vmatprep.subr.bf16.mxu0 0
    %477 = vmatpush2.bf16.msra.mxu0 0
    %478 = vmatprep.subr.bf16.mxu0 0
    %479 = vmatpush2.bf16.msra.mxu0 0
    %480 = vmatprep.subr.bf16.mxu0 0
    %481 = vmatpush2.bf16.msra.mxu0 0
    %482 = vmatprep.subr.bf16.mxu0 0
    %483 = vmatpush2.bf16.msra.mxu0 0
    %484 = vmatprep.mubr.bf16.mxu0 0
    %485 = vmatmul.mubr.bf16.gmra.mxu0 %v451
    %v486 = vpop.f32.mrf.mxu0
    %v487 = vadd.f32 %v169, %v486
    %v488 = vpop.f32.mrf.mxu0
    %v489 = vpop.f32.mrf.mxu0
    %v490 = vpop.f32.mrf.mxu0
    %491 = vdwg.mxu0
    %v492 = vrot.slane %v254, 3
    %v494 = vadd.f32 %v487, %v492
    %v495 = vtanh.pop %v494
    %v496 = vpack.c.bf16 %v495, %v495
    %497 = vmatprep.subr.bf16.mxu0 0
    %498 = vmatpush1.bf16.msra.mxu0 %v302
    %499 = vmatprep.subr.bf16.mxu0 0
    %500 = vmatpush1.bf16.msra.mxu0 %v301
    %501 = vmatprep.subr.bf16.mxu0 0
    %502 = vmatpush1.bf16.msra.mxu0 %v300
    %503 = vmatprep.subr.bf16.mxu0 0
    %504 = vmatpush1.bf16.msra.mxu0 %v299
    %505 = vmatprep.subr.bf16.mxu0 0
    %506 = vmatpush1.bf16.msra.mxu0 %v298
    %507 = vmatprep.subr.bf16.mxu0 0
    %508 = vmatpush1.bf16.msra.mxu0 %v297
    %509 = vmatprep.subr.bf16.mxu0 0
    %510 = vmatpush1.bf16.msra.mxu0 %v296
    %511 = vmatprep.subr.bf16.mxu0 0
    %512 = vmatpush1.bf16.msra.mxu0 %v295
    %513 = vmatprep.subr.bf16.mxu0 0
    %514 = vmatpush2.bf16.msra.mxu0 0
    %515 = vmatprep.subr.bf16.mxu0 0
    %516 = vmatpush2.bf16.msra.mxu0 0
    %517 = vmatprep.subr.bf16.mxu0 0
    %518 = vmatpush2.bf16.msra.mxu0 0
    %519 = vmatprep.subr.bf16.mxu0 0
    %520 = vmatpush2.bf16.msra.mxu0 0
    %521 = vmatprep.subr.bf16.mxu0 0
    %522 = vmatpush2.bf16.msra.mxu0 0
    %523 = vmatprep.subr.bf16.mxu0 0
    %524 = vmatpush2.bf16.msra.mxu0 0
    %525 = vmatprep.subr.bf16.mxu0 0
    %526 = vmatpush2.bf16.msra.mxu0 0
    %527 = vmatprep.subr.bf16.mxu0 0
    %528 = vmatpush2.bf16.msra.mxu0 0
    %529 = vmatprep.mubr.bf16.mxu0 0
    %530 = vmatmul.mubr.bf16.gmra.mxu0 %v496
    %v531 = vpop.f32.mrf.mxu0
    %v532 = vadd.f32 %v169, %v531
    %v533 = vpop.f32.mrf.mxu0
    %v534 = vpop.f32.mrf.mxu0
    %v535 = vpop.f32.mrf.mxu0
    %536 = vdwg.mxu0
    %v537 = vrot.slane %v254, 4
    %v539 = vadd.f32 %v532, %v537
    %v540 = vtanh.pop %v539
    %v541 = vpack.c.bf16 %v540, %v540
    %542 = vmatprep.subr.bf16.mxu0 0
    %543 = vmatpush1.bf16.msra.mxu0 %v302
    %544 = vmatprep.subr.bf16.mxu0 0
    %545 = vmatpush1.bf16.msra.mxu0 %v301
    %546 = vmatprep.subr.bf16.mxu0 0
    %547 = vmatpush1.bf16.msra.mxu0 %v300
    %548 = vmatprep.subr.bf16.mxu0 0
    %549 = vmatpush1.bf16.msra.mxu0 %v299
    %550 = vmatprep.subr.bf16.mxu0 0
    %551 = vmatpush1.bf16.msra.mxu0 %v298
    %552 = vmatprep.subr.bf16.mxu0 0
    %553 = vmatpush1.bf16.msra.mxu0 %v297
    %554 = vmatprep.subr.bf16.mxu0 0
    %555 = vmatpush1.bf16.msra.mxu0 %v296
    %556 = vmatprep.subr.bf16.mxu0 0
    %557 = vmatpush1.bf16.msra.mxu0 %v295
    %558 = vmatprep.subr.bf16.mxu0 0
    %559 = vmatpush2.bf16.msra.mxu0 0
    %560 = vmatprep.subr.bf16.mxu0 0
    %561 = vmatpush2.bf16.msra.mxu0 0
    %562 = vmatprep.subr.bf16.mxu0 0
    %563 = vmatpush2.bf16.msra.mxu0 0
    %564 = vmatprep.subr.bf16.mxu0 0
    %565 = vmatpush2.bf16.msra.mxu0 0
    %566 = vmatprep.subr.bf16.mxu0 0
    %567 = vmatpush2.bf16.msra.mxu0 0
    %568 = vmatprep.subr.bf16.mxu0 0
    %569 = vmatpush2.bf16.msra.mxu0 0
    %570 = vmatprep.subr.bf16.mxu0 0
    %571 = vmatpush2.bf16.msra.mxu0 0
    %572 = vmatprep.subr.bf16.mxu0 0
    %573 = vmatpush2.bf16.msra.mxu0 0
    %574 = vmatprep.mubr.bf16.mxu0 0
    %575 = vmatmul.mubr.bf16.gmra.mxu0 %v541
    %v576 = vpop.f32.mrf.mxu0
    %v577 = vadd.f32 %v169, %v576
    %v578 = vpop.f32.mrf.mxu0
    %v579 = vpop.f32.mrf.mxu0
    %v580 = vpop.f32.mrf.mxu0
    %581 = vdwg.mxu0
    %v582 = vrot.slane %v254, 5
    %v584 = vadd.f32 %v577, %v582
    %v585 = vtanh.pop %v584
    %v586 = vpack.c.bf16 %v585, %v585
    %587 = vmatprep.subr.bf16.mxu0 0
    %588 = vmatpush1.bf16.msra.mxu0 %v302
    %589 = vmatprep.subr.bf16.mxu0 0
    %590 = vmatpush1.bf16.msra.mxu0 %v301
    %591 = vmatprep.subr.bf16.mxu0 0
    %592 = vmatpush1.bf16.msra.mxu0 %v300
    %593 = vmatprep.subr.bf16.mxu0 0
    %594 = vmatpush1.bf16.msra.mxu0 %v299
    %595 = vmatprep.subr.bf16.mxu0 0
    %596 = vmatpush1.bf16.msra.mxu0 %v298
    %597 = vmatprep.subr.bf16.mxu0 0
    %598 = vmatpush1.bf16.msra.mxu0 %v297
    %599 = vmatprep.subr.bf16.mxu0 0
    %600 = vmatpush1.bf16.msra.mxu0 %v296
    %601 = vmatprep.subr.bf16.mxu0 0
    %602 = vmatpush1.bf16.msra.mxu0 %v295
    %603 = vmatprep.subr.bf16.mxu0 0
    %604 = vmatpush2.bf16.msra.mxu0 0
    %605 = vmatprep.subr.bf16.mxu0 0
    %606 = vmatpush2.bf16.msra.mxu0 0
    %607 = vmatprep.subr.bf16.mxu0 0
    %608 = vmatpush2.bf16.msra.mxu0 0
    %609 = vmatprep.subr.bf16.mxu0 0
    %610 = vmatpush2.bf16.msra.mxu0 0
    %611 = vmatprep.subr.bf16.mxu0 0
    %612 = vmatpush2.bf16.msra.mxu0 0
    %613 = vmatprep.subr.bf16.mxu0 0
    %614 = vmatpush2.bf16.msra.mxu0 0
    %615 = vmatprep.subr.bf16.mxu0 0
    %616 = vmatpush2.bf16.msra.mxu0 0
    %617 = vmatprep.subr.bf16.mxu0 0
    %618 = vmatpush2.bf16.msra.mxu0 0
    %619 = vmatprep.mubr.bf16.mxu0 0
    %620 = vmatmul.mubr.bf16.gmra.mxu0 %v586
    %v621 = vpop.f32.mrf.mxu0
    %v622 = vadd.f32 %v169, %v621
    %v623 = vpop.f32.mrf.mxu0
    %v624 = vpop.f32.mrf.mxu0
    %v625 = vpop.f32.mrf.mxu0
    %626 = vdwg.mxu0
    %v627 = vrot.slane %v254, 6
    %v629 = vadd.f32 %v622, %v627
    %v630 = vtanh.pop %v629
    %v631 = vpack.c.bf16 %v630, %v630
    %632 = vmatprep.subr.bf16.mxu0 0
    %633 = vmatpush1.bf16.msra.mxu0 %v302
    %634 = vmatprep.subr.bf16.mxu0 0
    %635 = vmatpush1.bf16.msra.mxu0 %v301
    %636 = vmatprep.subr.bf16.mxu0 0
    %637 = vmatpush1.bf16.msra.mxu0 %v300
    %638 = vmatprep.subr.bf16.mxu0 0
    %639 = vmatpush1.bf16.msra.mxu0 %v299
    %640 = vmatprep.subr.bf16.mxu0 0
    %641 = vmatpush1.bf16.msra.mxu0 %v298
    %642 = vmatprep.subr.bf16.mxu0 0
    %643 = vmatpush1.bf16.msra.mxu0 %v297
    %644 = vmatprep.subr.bf16.mxu0 0
    %645 = vmatpush1.bf16.msra.mxu0 %v296
    %646 = vmatprep.subr.bf16.mxu0 0
    %647 = vmatpush1.bf16.msra.mxu0 %v295
    %648 = vmatprep.subr.bf16.mxu0 0
    %649 = vmatpush2.bf16.msra.mxu0 0
    %650 = vmatprep.subr.bf16.mxu0 0
    %651 = vmatpush2.bf16.msra.mxu0 0
    %652 = vmatprep.subr.bf16.mxu0 0
    %653 = vmatpush2.bf16.msra.mxu0 0
    %654 = vmatprep.subr.bf16.mxu0 0
    %655 = vmatpush2.bf16.msra.mxu0 0
    %656 = vmatprep.subr.bf16.mxu0 0
    %657 = vmatpush2.bf16.msra.mxu0 0
    %658 = vmatprep.subr.bf16.mxu0 0
    %659 = vmatpush2.bf16.msra.mxu0 0
    %660 = vmatprep.subr.bf16.mxu0 0
    %661 = vmatpush2.bf16.msra.mxu0 0
    %662 = vmatprep.subr.bf16.mxu0 0
    %663 = vmatpush2.bf16.msra.mxu0 0
    %664 = vmatprep.mubr.bf16.mxu0 0
    %665 = vmatmul.mubr.bf16.gmra.mxu0 %v631
    %v666 = vpop.f32.mrf.mxu0
    %v667 = vadd.f32 %v169, %v666
    %v668 = vpop.f32.mrf.mxu0
    %v669 = vpop.f32.mrf.mxu0
    %v670 = vpop.f32.mrf.mxu0
    %671 = vdwg.mxu0
    %v672 = vrot.slane %v254, 7
    %v674 = vadd.f32 %v667, %v672
    %v675 = vtanh.pop %v674
    %v676 = vpack.c.bf16 %v675, %v675
    %677 = vmatprep.subr.bf16.mxu0 0
    %678 = vmatpush1.bf16.msra.mxu0 %v302
    %679 = vmatprep.subr.bf16.mxu0 0
    %680 = vmatpush1.bf16.msra.mxu0 %v301
    %681 = vmatprep.subr.bf16.mxu0 0
    %682 = vmatpush1.bf16.msra.mxu0 %v300
    %683 = vmatprep.subr.bf16.mxu0 0
    %684 = vmatpush1.bf16.msra.mxu0 %v299
    %685 = vmatprep.subr.bf16.mxu0 0
    %686 = vmatpush1.bf16.msra.mxu0 %v298
    %687 = vmatprep.subr.bf16.mxu0 0
    %688 = vmatpush1.bf16.msra.mxu0 %v297
    %689 = vmatprep.subr.bf16.mxu0 0
    %690 = vmatpush1.bf16.msra.mxu0 %v296
    %691 = vmatprep.subr.bf16.mxu0 0
    %692 = vmatpush1.bf16.msra.mxu0 %v295
    %693 = vmatprep.subr.bf16.mxu0 0
    %694 = vmatpush2.bf16.msra.mxu0 0
    %695 = vmatprep.subr.bf16.mxu0 0
    %696 = vmatpush2.bf16.msra.mxu0 0
    %697 = vmatprep.subr.bf16.mxu0 0
    %698 = vmatpush2.bf16.msra.mxu0 0
    %699 = vmatprep.subr.bf16.mxu0 0
    %700 = vmatpush2.bf16.msra.mxu0 0
    %701 = vmatprep.subr.bf16.mxu0 0
    %702 = vmatpush2.bf16.msra.mxu0 0
    %703 = vmatprep.subr.bf16.mxu0 0
    %704 = vmatpush2.bf16.msra.mxu0 0
    %705 = vmatprep.subr.bf16.mxu0 0
    %706 = vmatpush2.bf16.msra.mxu0 0
    %707 = vmatprep.subr.bf16.mxu0 0
    %708 = vmatpush2.bf16.msra.mxu0 0
    %709 = vmatprep.mubr.bf16.mxu0 0
    %710 = vmatmul.mubr.bf16.gmra.mxu0 %v676
    %v711 = vpop.f32.mrf.mxu0
    %v712 = vadd.f32 %v169, %v711
    %v713 = vpop.f32.mrf.mxu0
    %v714 = vpop.f32.mrf.mxu0
    %v715 = vpop.f32.mrf.mxu0
    %716 = vdwg.mxu0
    %v717 = vtanh.pop %v712
    %vm718 = vcmp.ge.s32.totalorder %v260, 32
    %vm719 = vcmp.lt.s32.totalorder %v260, 96
    %vm720 = vmand %vm718, %vm719
    %v721 = vsel %vm720, %v717, %v675
    %v722 = vpack.c.bf16 %v721, %v721
    %723 = vmatprep.subr.bf16.mxu0 0
    %724 = vmatpush1.bf16.msra.mxu0 %v302
    %725 = vmatprep.subr.bf16.mxu0 0
    %726 = vmatpush1.bf16.msra.mxu0 %v301
    %727 = vmatprep.subr.bf16.mxu0 0
    %728 = vmatpush1.bf16.msra.mxu0 %v300
    %729 = vmatprep.subr.bf16.mxu0 0
    %730 = vmatpush1.bf16.msra.mxu0 %v299
    %731 = vmatprep.subr.bf16.mxu0 0
    %732 = vmatpush1.bf16.msra.mxu0 %v298
    %733 = vmatprep.subr.bf16.mxu0 0
    %734 = vmatpush1.bf16.msra.mxu0 %v297
    %735 = vmatprep.subr.bf16.mxu0 0
    %736 = vmatpush1.bf16.msra.mxu0 %v296
    %737 = vmatprep.subr.bf16.mxu0 0
    %738 = vmatpush1.bf16.msra.mxu0 %v295
    %739 = vmatprep.subr.bf16.mxu0 0
    %740 = vmatpush2.bf16.msra.mxu0 0
    %741 = vmatprep.subr.bf16.mxu0 0
    %742 = vmatpush2.bf16.msra.mxu0 0
    %743 = vmatprep.subr.bf16.mxu0 0
    %744 = vmatpush2.bf16.msra.mxu0 0
    %745 = vmatprep.subr.bf16.mxu0 0
    %746 = vmatpush2.bf16.msra.mxu0 0
    %747 = vmatprep.subr.bf16.mxu0 0
    %748 = vmatpush2.bf16.msra.mxu0 0
    %749 = vmatprep.subr.bf16.mxu0 0
    %750 = vmatpush2.bf16.msra.mxu0 0
    %751 = vmatprep.subr.bf16.mxu0 0
    %752 = vmatpush2.bf16.msra.mxu0 0
    %753 = vmatprep.subr.bf16.mxu0 0
    %754 = vmatpush2.bf16.msra.mxu0 0
    %755 = vmatprep.mubr.bf16.mxu0 0
    %756 = vmatmul.mubr.bf16.gmra.mxu0 %v722
    %v757 = vpop.f32.mrf.mxu0
    %v758 = vadd.f32 %v169, %v757
    %v759 = vpop.f32.mrf.mxu0
    %v760 = vpop.f32.mrf.mxu0
    %v761 = vpop.f32.mrf.mxu0
    %762 = vdwg.mxu0
    %v763 = vtanh.pop %v758
    %vm764 = vcmp.ge.s32.totalorder %v260, 64
    %vm765 = vmand %vm764, %vm719
    %v766 = vsel %vm765, %v763, %v721
    %v768 = vrot.slane %v495, 7
    %v771 = vrot.slane %v540, 6
    %v774 = vrot.slane %v585, 5
    %v777 = vrot.slane %v630, 4
    %v780 = vrot.slane %v675, 3
    %v783 = vrot.slane %v721, 2
    %v786 = vrot.slane %v766, 1
    %v788 = vsel %vm104, %v450, %v768
    %v789 = vsel %vm106, %v788, %v771
    %v790 = vsel %vm108, %v789, %v774
    %v791 = vsel %vm110, %v790, %v777
    %v792 = vsel %vm112, %v791, %v780
    %v793 = vsel %vm114, %v792, %v783
    %v794 = vsel %vm116, %v793, %v786
    %v795 = vpack.c.bf16 %v794, %v794
    %v796 = vlaneseq
    %v797 = vshrl.u32 %v796, 7
    %v798 = vsub.s32 0, %v797
    %v799 = vrot.slane %v170, %v798
    %v816 = vunpack.c.l.b16 %v153
    %v817 = vunpack.c.l.b16 %v154
    %v818 = vunpack.c.l.b16 %v155
    %v819 = vunpack.c.l.b16 %v156
    %v820 = vunpack.c.l.b16 %v157
    %v821 = vunpack.c.l.b16 %v158
    %v822 = vunpack.c.l.b16 %v159
    %v823 = vunpack.c.l.b16 %v160
    %v824 = vunpack.c.l.b16 %v161
    %v825 = vunpack.c.l.b16 %v162
    %v826 = vunpack.c.l.b16 %v163
    %v827 = vunpack.c.l.b16 %v164
    %v828 = vunpack.c.l.b16 %v165
    %v829 = vunpack.c.l.b16 %v166
    %v830 = vunpack.c.l.b16 %v167
    %v831 = vunpack.c.l.b16 %v168
    %v832 = vpack.c.b16 %v817, %v816
    %v833 = vpack.c.b16 %v819, %v818
    %v834 = vpack.c.b16 %v821, %v820
    %v835 = vpack.c.b16 %v823, %v822
    %v836 = vpack.c.b16 %v825, %v824
    %v837 = vpack.c.b16 %v827, %v826
    %v838 = vpack.c.b16 %v829, %v828
    %v839 = vpack.c.b16 %v831, %v830
    %848 = vmatprep.subr.bf16.mxu0 0
    %849 = vmatpush1.bf16.msra.mxu0 %v839
    %850 = vmatprep.subr.bf16.mxu0 0
    %851 = vmatpush1.bf16.msra.mxu0 %v838
    %852 = vmatprep.subr.bf16.mxu0 0
    %853 = vmatpush1.bf16.msra.mxu0 %v837
    %854 = vmatprep.subr.bf16.mxu0 0
    %855 = vmatpush1.bf16.msra.mxu0 %v836
    %856 = vmatprep.subr.bf16.mxu0 0
    %857 = vmatpush1.bf16.msra.mxu0 %v835
    %858 = vmatprep.subr.bf16.mxu0 0
    %859 = vmatpush1.bf16.msra.mxu0 %v834
    %860 = vmatprep.subr.bf16.mxu0 0
    %861 = vmatpush1.bf16.msra.mxu0 %v833
    %862 = vmatprep.subr.bf16.mxu0 0
    %863 = vmatpush1.bf16.msra.mxu0 %v832
    %864 = vmatprep.subr.bf16.mxu0 0
    %865 = vmatpush2.bf16.msra.mxu0 0
    %866 = vmatprep.subr.bf16.mxu0 0
    %867 = vmatpush2.bf16.msra.mxu0 0
    %868 = vmatprep.subr.bf16.mxu0 0
    %869 = vmatpush2.bf16.msra.mxu0 0
    %870 = vmatprep.subr.bf16.mxu0 0
    %871 = vmatpush2.bf16.msra.mxu0 0
    %872 = vmatprep.subr.bf16.mxu0 0
    %873 = vmatpush2.bf16.msra.mxu0 0
    %874 = vmatprep.subr.bf16.mxu0 0
    %875 = vmatpush2.bf16.msra.mxu0 0
    %876 = vmatprep.subr.bf16.mxu0 0
    %877 = vmatpush2.bf16.msra.mxu0 0
    %878 = vmatprep.subr.bf16.mxu0 0
    %879 = vmatpush2.bf16.msra.mxu0 0
    %880 = vmatprep.mubr.bf16.mxu0 0
    %881 = vmatmul.mubr.bf16.gmra.mxu0 %v795
    %v882 = vpop.f32.mrf.mxu0
    %v883 = vadd.f32 %v799, %v882
    %v884 = vpop.f32.mrf.mxu0
    %v885 = vpop.f32.mrf.mxu0
    %v886 = vpop.f32.mrf.mxu0
    %887 = vdwg.mxu0
    %v888 = vmax.f32 %v883, 0.0
    %889 = vst [vmem:[#allocation9] sm:$0xff] %v888
    // Predicated region
    $region22: #{rnn_model_forward.1} parent=1 // pred_check
      _
    $region23: #{rnn_model_forward.1} parent=1 // pred_check_branch
      %891 = sbr.rel (0) target = $region25
    $region24: #{rnn_model_forward.1} parent=1 // pred_region
      %s893 = ssub.s32 128, 128
      %894 = vsyncadd [#allocation6], %s893
      %s896 = sshll.u32 [#allocation9], 4
      %s897 = int_to_ptr.vmem [resolvable:$true] %s896
      %899 = dma.vmem_to_hbm [thread:$0]  %s897, 128, %s4, [#allocation6]
    $region25: #{rnn_model_forward.1} parent=1 // pred_fallthru
      _
    // Predicated region
    $region26: #{rnn_model_forward.1} parent=1 // pred_check
      _
    $region27: #{rnn_model_forward.1} parent=1 // pred_check_branch
      %901 = sbr.rel (0) target = $region29
    $region28: #{rnn_model_forward.1} parent=1 // pred_region
      %902 = dma.done [#allocation6], 128
    $region29: #{rnn_model_forward.1} parent=1 // pred_fallthru
      _
    %903 = vsyncpa [#allocation5], 1
    %904 = vsyncpa [#allocation8], 1
    %905 = vsyncpa [#allocation6], 1

</llo_original>
